<compile_context>
chip_gen: v7x
topology: tpu7x:2x2x1
jax: 0.10.0
libtpu: 0.0.40
codegen_flags: <defaults>
</compile_context>

<pallas_src>
import functools

import jax
import jax.numpy as jnp
import numpy as np
from jax import lax
from jax.experimental import pallas as pl
from jax.experimental.pallas import tpu as pltpu


def _round_up(x, m):
    return (x + m - 1) // m * m


def _vmem_limit_bytes():
    # ~3/4 of physical VMEM: 48 MiB on v7x (64 MiB), 96 MiB on v5e/v6e (128 MiB).
    try:
        cap = pltpu.get_tpu_info().vmem_capacity_bytes
    except Exception:
        cap = 128 * 1024 * 1024
    return int(cap) * 3 // 4


# ----------------------------------------------------------------------------
# Kernel A: encoder + fused colbert/sparse projection (flattened tokens)
# ----------------------------------------------------------------------------
def _encode_kernel(x_ref, ids_ref, amask_ref, wenc_ref, benc_ref,
                   wcat_ref, bcat_ref, colbert_ref, tw_ref,
                   *, colbert_dim, special_ids):
    D = colbert_dim
    eps2 = 1e-24  # (1e-12)^2, matches torch F.normalize default eps

    # synthetic backbone: dense + tanh ("last_hidden_state"), bf16 MXU, f32 acc
    h = jnp.tanh(jnp.dot(x_ref[...], wenc_ref[...],
                         preferred_element_type=jnp.float32) + benc_ref[...])

    # fused colbert + sparse projection: one bf16 MXU matmul
    y = (jnp.dot(h.astype(jnp.bfloat16), wcat_ref[...],
                 preferred_element_type=jnp.float32) + bcat_ref[...])

    # sparse token weights: static lane slice + relu; zero special tokens
    tw = jnp.maximum(y[:, D:D + 1], 0.0)                       # [T, 1]
    ids = ids_ref[...]
    is_special = ids == special_ids[0]
    for tid in special_ids[1:]:
        is_special = jnp.logical_or(is_special, ids == tid)
    tw_ref[...] = jnp.where(is_special, 0.0, tw)

    # colbert head: first D lanes, attention mask, rsqrt L2-normalize
    cv = y[:, :D] * amask_ref[...]
    ss = jnp.sum(cv * cv, axis=-1, keepdims=True)
    colbert_ref[...] = cv * lax.rsqrt(jnp.maximum(ss, eps2))


# ----------------------------------------------------------------------------
# Kernel C: dense head (L2-normalized CLS vector), 1-step
# ----------------------------------------------------------------------------
def _dense_head_kernel(x_ref, wenc_ref, benc_ref, dense_ref):
    cls = jnp.tanh(jnp.dot(x_ref[...], wenc_ref[...],
                           preferred_element_type=jnp.float32) + benc_ref[...])
    ss = jnp.sum(cls * cls, axis=-1, keepdims=True)
    dense_ref[...] = cls * lax.rsqrt(jnp.maximum(ss, 1e-24))


# ----------------------------------------------------------------------------
# Kernel B: sparse scatter-max, V-only grid, sorted ids + pruned chunk ranges
# ----------------------------------------------------------------------------
def _sparse_scatter_kernel(cstart_ref, cend_ref, ids_ref, tw_ref, sparse_ref,
                           *, v_tile):
    vi = pl.program_id(0)
    v0 = vi * v_tile
    iota = lax.broadcasted_iota(jnp.int32, (1, 1, v_tile), 2) + v0

    def body(c, acc):
        ids = ids_ref[c][:, :, None]                       # [B, SC, 1]
        tw = tw_ref[c][:, :, None]                          # [B, SC, 1]
        contrib = jnp.where(ids == iota, tw, 0.0)           # [B, SC, TV]
        return jnp.maximum(acc, jnp.max(contrib, axis=1))

    sparse_ref[...] = lax.fori_loop(cstart_ref[vi], cend_ref[vi], body,
                                    jnp.zeros(sparse_ref.shape, jnp.float32))


# ----------------------------------------------------------------------------
# Wrapper
# ----------------------------------------------------------------------------
def rbln_bge_m3_compute_score(input_ids, attention_mask, params, *,
                              vocab_size, unused_token_ids,
                              v_tile=512, s_chunk=256):
    ids = input_ids.astype(jnp.int32)
    amask = attention_mask.astype(jnp.float32)
    B, S = ids.shape
    H = params["w_enc"].shape[0]
    D = params["w_col"].shape[1]
    Dp = _round_up(D + 1, 128)   # colbert cols + 1 sparse col, lane-padded
    special_ids = tuple(int(t) for t in unused_token_ids)
    vmem_limit = _vmem_limit_bytes()

    # ---- weights: bf16 operands, f32 biases ---------------------------------
    embed_bf16 = params["embed"].astype(jnp.bfloat16)
    w_enc = params["w_enc"].astype(jnp.bfloat16)
    b_enc = params["b_enc"].astype(jnp.float32)
    w_cat = jnp.zeros((H, Dp), jnp.float32)
    w_cat = w_cat.at[:, :D].set(params["w_col"])
    w_cat = w_cat.at[:, D].set(params["w_sp"][0])
    w_cat = w_cat.astype(jnp.bfloat16)
    b_cat = jnp.zeros((1, Dp), jnp.float32)
    b_cat = b_cat.at[0, :D].set(params["b_col"][0])
    b_cat = b_cat.at[0, D].set(params["b_sp"][0, 0])

    # Embedding gather stays in plain JAX (data-dependent row lookup).
    x = jnp.take(embed_bf16, ids, axis=0)                    # [B, S, H] bf16

    # ---- dense head (CLS row) as a 1-step kernel -----------------------------
    dense = pl.pallas_call(
        _dense_head_kernel,
        grid=(1,),
        out_shape=jax.ShapeDtypeStruct((B, H), jnp.float32),
        in_specs=[pl.BlockSpec((B, H), lambda i: (0, 0)),
                  pl.BlockSpec((H, H), lambda i: (0, 0)),
                  pl.BlockSpec((1, H), lambda i: (0, 0))],
        out_specs=pl.BlockSpec((B, H), lambda i: (0, 0)),
        compiler_params=pltpu.CompilerParams(
            dimension_semantics=("arbitrary",)),
    )(x[:, 0, :], w_enc, b_enc)

    # ---- token-tile size from the VMEM budget (B-independent, flattened) ----
    per_tok = (8 * H + 12 * D + 4 * Dp + 64) * 3 // 2        # rough bytes/token
    weight_bytes = 2 * (H * H * 2 + H * Dp * 2 + (H + Dp) * 4)
    budget = max(vmem_limit - weight_bytes - (4 << 20), 4 << 20)
    ts_cap = max(256, min(1024, (budget // per_tok) // 128 * 128))
    if B * S <= ts_cap:
        S_pad, ts = S, B * S
    else:
        ts = ts_cap
        S_pad = _round_up(S, ts)

    pad_s = S_pad - S
    if pad_s:
        ids_p = jnp.pad(ids, ((0, 0), (0, pad_s)), constant_values=special_ids[0])
        amask_p = jnp.pad(amask, ((0, 0), (0, pad_s)))
        x_p = jnp.pad(x, ((0, 0), (0, pad_s), (0, 0)))
    else:
        ids_p, amask_p, x_p = ids, amask, x

    T = B * S_pad
    x_flat = x_p.reshape(T, H)
    ids_flat = ids_p.reshape(T, 1)
    amask_flat = amask_p.reshape(T, 1)

    enc = functools.partial(_encode_kernel, colbert_dim=D, special_ids=special_ids)
    # NOTE: constant-index weight inputs could use pipeline_mode=pl.Buffered(1)
    # to save a duplicated VMEM buffer; left default for lowering robustness.
    colbert_flat, tw_flat = pl.pallas_call(
        enc,
        grid=(T // ts,),
        out_shape=(jax.ShapeDtypeStruct((T, D), jnp.float32),
                   jax.ShapeDtypeStruct((T, 1), jnp.float32)),
        in_specs=[
            pl.BlockSpec((ts, H), lambda i: (i, 0)),         # x (bf16)
            pl.BlockSpec((ts, 1), lambda i: (i, 0)),         # ids
            pl.BlockSpec((ts, 1), lambda i: (i, 0)),         # attention mask
            pl.BlockSpec((H, H), lambda i: (0, 0)),          # w_enc
            pl.BlockSpec((1, H), lambda i: (0, 0)),          # b_enc
            pl.BlockSpec((H, Dp), lambda i: (0, 0)),         # fused w_cat
            pl.BlockSpec((1, Dp), lambda i: (0, 0)),         # fused b_cat
        ],
        out_specs=(pl.BlockSpec((ts, D), lambda i: (i, 0)),
                   pl.BlockSpec((ts, 1), lambda i: (i, 0))),
        compiler_params=pltpu.CompilerParams(
            dimension_semantics=("parallel",),               # shards on v7x 2 TCs
            vmem_limit_bytes=vmem_limit),
    )(x_flat, ids_flat, amask_flat, w_enc, b_enc, w_cat, b_cat)

    tw_bs = tw_flat.reshape(B, S_pad)[:, :S]                 # [B, S]
    colbert = colbert_flat.reshape(B, S_pad, D)[:, 1:S, :]   # drop CLS row / padding
    # TODO(synk): a consumer reading the [B,S_pad,D] slab directly (ignoring row
    # 0 and padding) would avoid this wrapper-side trim copy.

    # ---- sparse scatter-max: sort (ids, tw), prefetch per-V-tile chunk ranges -
    tv = max(128, min(_round_up(v_tile, 128), _round_up(vocab_size, 128)))
    Vp = _round_up(vocab_size, tv)
    nV = Vp // tv
    sc = min(s_chunk, S)
    S_srt = _round_up(S, sc)
    nC = S_srt // sc

    ids_sorted, tw_sorted = lax.sort((ids, tw_bs), dimension=1, num_keys=1)
    v_edges = (jnp.arange(nV + 1) * tv).astype(jnp.int32)
    edges = jax.vmap(lambda row: jnp.searchsorted(row, v_edges))(ids_sorted)
    c_start = (jnp.min(edges[:, :-1], axis=0) // sc).astype(jnp.int32)     # [nV]
    c_end = ((jnp.max(edges[:, 1:], axis=0) + sc - 1) // sc).astype(jnp.int32)

    if S_srt > S:  # sentinel ids never match any V-tile; tw 0 contributes nothing
        ids_sorted = jnp.pad(ids_sorted, ((0, 0), (0, S_srt - S)), constant_values=Vp)
        tw_sorted = jnp.pad(tw_sorted, ((0, 0), (0, S_srt - S)))
    ids_chunks = ids_sorted.reshape(B, nC, sc).transpose(1, 0, 2)   # [nC, B, SC]
    tw_chunks = tw_sorted.reshape(B, nC, sc).transpose(1, 0, 2)

    sp = functools.partial(_sparse_scatter_kernel, v_tile=tv)
    sparse_pad = pl.pallas_call(
        sp,
        grid_spec=pltpu.PrefetchScalarGridSpec(
            num_scalar_prefetch=2,
            grid=(nV,),
            in_specs=[pl.BlockSpec((nC, B, sc), lambda vi, cs, ce: (0, 0, 0)),
                      pl.BlockSpec((nC, B, sc), lambda vi, cs, ce: (0, 0, 0))],
            out_specs=pl.BlockSpec((B, tv), lambda vi, cs, ce: (0, vi))),
        out_shape=jax.ShapeDtypeStruct((B, Vp), jnp.float32),
        compiler_params=pltpu.CompilerParams(
            dimension_semantics=("parallel",),
            vmem_limit_bytes=vmem_limit),
    )(c_start, c_end, ids_chunks, tw_chunks)

    return dense, sparse_pad[:, :vocab_size], colbert


# ----------------------------------------------------------------------------
# Pure-JAX reference (same bf16 operand casts, f32 accumulation)
# ----------------------------------------------------------------------------
def _reference(input_ids, attention_mask, params, vocab_size, unused_token_ids):
    eps = 1e-12
    x = jnp.take(params["embed"], input_ids, axis=0).astype(jnp.bfloat16)
    w_enc = params["w_enc"].astype(jnp.bfloat16)
    h = jnp.tanh(jnp.dot(x, w_enc, preferred_element_type=jnp.float32)
                 + params["b_enc"])
    hb = h.astype(jnp.bfloat16)
    cls = h[:, 0, :]
    dense = cls / jnp.maximum(
        jnp.sqrt(jnp.sum(cls * cls, -1, keepdims=True)), eps)
    tw = (jnp.dot(hb, params["w_sp"].astype(jnp.bfloat16).T,
                  preferred_element_type=jnp.float32)[..., 0]
          + params["b_sp"][0, 0])
    tw = jnp.maximum(tw, 0.0)
    oh = (input_ids[:, :, None] == jnp.arange(vocab_size)[None, None, :])
    sparse = jnp.max(jnp.where(oh, tw[:, :, None], 0.0), axis=1)
    for tid in unused_token_ids:
        sparse = sparse.at[:, tid].set(0.0)
    cv = (jnp.dot(hb, params["w_col"].astype(jnp.bfloat16),
                  preferred_element_type=jnp.float32)
          + params["b_col"])[:, 1:, :]
    cv = cv * attention_mask.astype(jnp.float32)[:, 1:, None]
    colbert = cv / jnp.maximum(
        jnp.sqrt(jnp.sum(cv * cv, -1, keepdims=True)), eps)
    return dense, sparse, colbert


if __name__ == "__main__":
    B, S, H, V, D = 2, 8, 32, 64, 32
    CLS_ID, PAD_ID, EOS_ID, UNK_ID = 0, 1, 2, 3
    unused = (CLS_ID, EOS_ID, PAD_ID, UNK_ID)

    key = jax.random.PRNGKey(0)
    ks = jax.random.split(key, 8)

    # deterministic synthetic inputs: [CLS] tok ... tok [EOS] with some padding
    input_ids = jax.random.randint(ks[0], (B, S), 4, V).astype(jnp.int32)
    input_ids = input_ids.at[:, 0].set(CLS_ID)
    input_ids = input_ids.at[:, -1].set(EOS_ID)
    input_ids = input_ids.at[1, 6:].set(PAD_ID)
    attention_mask = jnp.ones((B, S), jnp.float32).at[1, 6:].set(0.0)

    params = {
        "embed": jax.random.normal(ks[1], (V, H), jnp.float32) * 0.1,
        "w_enc": jax.random.normal(ks[2], (H, H), jnp.float32) / jnp.sqrt(H),
        "b_enc": jax.random.normal(ks[3], (1, H), jnp.float32) * 0.01,
        "w_sp":  jax.random.normal(ks[4], (1, H), jnp.float32) / jnp.sqrt(H),
        "b_sp":  jnp.full((1, 1), 0.05, jnp.float32),
        "w_col": jax.random.normal(ks[5], (H, D), jnp.float32) / jnp.sqrt(H),
        "b_col": jax.random.normal(ks[6], (1, D), jnp.float32) * 0.01,
    }

    dense, sparse, colbert = rbln_bge_m3_compute_score(
        input_ids, attention_mask, params,
        vocab_size=V, unused_token_ids=unused)
    jax.block_until_ready((dense, sparse, colbert))

    ref_d, ref_s, ref_c = _reference(input_ids, attention_mask, params, V, unused)
    np.testing.assert_allclose(np.asarray(dense), np.asarray(ref_d),
                               atol=1e-4, rtol=1e-3)
    np.testing.assert_allclose(np.asarray(sparse), np.asarray(ref_s),
                               atol=1e-4, rtol=1e-3)
    np.testing.assert_allclose(np.asarray(colbert), np.asarray(ref_c),
                               atol=1e-4, rtol=1e-3)

    print("KERNEL_OK")
</pallas_src>

<mosaic_0001>
module attributes {stable_mosaic.version = 11 : i64} {
  func.func @_dense_head_kernel(%arg0: i32, %arg1: memref<2x32xbf16, #tpu.memory_space<vmem>>, %arg2: memref<32x32xbf16, #tpu.memory_space<vmem>>, %arg3: memref<1x32xf32, #tpu.memory_space<vmem>>, %arg4: memref<2x32xf32, #tpu.memory_space<vmem>>) attributes {dimension_semantics = [#tpu.dimension_semantics<arbitrary>], iteration_bounds = array<i64: 1>, scalar_prefetch = 0 : i64, scratch_operands = 0 : i64, tpu.core_type = #tpu.core_type<tc>, window_params = [{pipeline_mode = #tpu.pipeline_mode<synchronous>, transform_indices = @transform_0, window_bounds = array<i64: 2, 32>}, {pipeline_mode = #tpu.pipeline_mode<synchronous>, transform_indices = @transform_1, window_bounds = array<i64: 32, 32>}, {pipeline_mode = #tpu.pipeline_mode<synchronous>, transform_indices = @transform_2, window_bounds = array<i64: 1, 32>}, {pipeline_mode = #tpu.pipeline_mode<synchronous>, transform_indices = @transform_3, window_bounds = array<i64: 2, 32>}]} {
    %c0 = arith.constant 0 : index
    %c0_0 = arith.constant 0 : index
    %0 = vector.load %arg1[%c0, %c0_0] : memref<2x32xbf16, #tpu.memory_space<vmem>>, vector<2x32xbf16>
    %c0_1 = arith.constant 0 : index
    %c0_2 = arith.constant 0 : index
    %1 = vector.load %arg2[%c0_1, %c0_2] : memref<32x32xbf16, #tpu.memory_space<vmem>>, vector<32x32xbf16>
    %cst = arith.constant dense<0.000000e+00> : vector<2x32xf32>
    %2 = tpu.matmul %0, %1, %cst {dimension_numbers = #tpu.dot_dimension_numbers<[1], [0], [0], [1], [0, 0, 1, 1], [], []>} : vector<2x32xbf16>, vector<32x32xbf16>, vector<2x32xf32> -> vector<2x32xf32>
    %c0_3 = arith.constant 0 : index
    %c0_4 = arith.constant 0 : index
    %3 = vector.load %arg3[%c0_3, %c0_4] : memref<1x32xf32, #tpu.memory_space<vmem>>, vector<1x32xf32>
    %4 = vector.broadcast %3 : vector<1x32xf32> to vector<2x32xf32>
    %5 = arith.addf %2, %4 : vector<2x32xf32>
    %6 = math.tanh %5 : vector<2x32xf32>
    %7 = arith.mulf %6, %6 : vector<2x32xf32>
    %cst_5 = arith.constant dense<0.000000e+00> : vector<2xf32>
    %8 = vector.multi_reduction <add>, %7, %cst_5 [1] : vector<2x32xf32> to vector<2xf32>
    %9 = vector.shape_cast %8 : vector<2xf32> to vector<2x1xf32>
    %cst_6 = arith.constant 1.000000e-24 : f32
    %10 = vector.broadcast %cst_6 : f32 to vector<2x1xf32>
    %11 = arith.maximumf %9, %10 : vector<2x1xf32>
    %12 = math.rsqrt %11 : vector<2x1xf32>
    %13 = vector.broadcast %12 : vector<2x1xf32> to vector<2x32xf32>
    %14 = arith.mulf %6, %13 : vector<2x32xf32>
    %c0_7 = arith.constant 0 : index
    %c0_8 = arith.constant 0 : index
    %15 = vector.load %arg4[%c0_7, %c0_8] : memref<2x32xf32, #tpu.memory_space<vmem>>, vector<2x32xf32>
    tpu.vector_store %arg4[%c0_7, %c0_8], %14 {strides = array<i32>} : memref<2x32xf32, #tpu.memory_space<vmem>>, vector<2x32xf32>,
    return
  }
  func.func @transform_0(%arg0: i32) -> (i32, i32) {
    %c0_i32 = arith.constant 0 : i32
    %c0_i32_0 = arith.constant 0 : i32
    %c0_i32_1 = arith.constant 0 : i32
    return %c0_i32, %c0_i32_0 : i32, i32
  }
  func.func @transform_1(%arg0: i32) -> (i32, i32) {
    %c0_i32 = arith.constant 0 : i32
    %c0_i32_0 = arith.constant 0 : i32
    %c0_i32_1 = arith.constant 0 : i32
    return %c0_i32, %c0_i32_0 : i32, i32
  }
  func.func @transform_2(%arg0: i32) -> (i32, i32) {
    %c0_i32 = arith.constant 0 : i32
    %c0_i32_0 = arith.constant 0 : i32
    %c0_i32_1 = arith.constant 0 : i32
    return %c0_i32, %c0_i32_0 : i32, i32
  }
  func.func @transform_3(%arg0: i32) -> (i32, i32) {
    %c0_i32 = arith.constant 0 : i32
    %c0_i32_0 = arith.constant 0 : i32
    %c0_i32_1 = arith.constant 0 : i32
    return %c0_i32, %c0_i32_0 : i32, i32
  }
}

</mosaic_0001>

<llo_original>
// kernel: tpu_custom_call.1
$region0: #{tpu_custom_call.1}
  #allocation0 [shape = 'u32[]', space=smem, size = 0x4, offset = 0x4, fixed_abs, tag = 'smem constant byte address 0x4 - core index']
  #allocation1 [shape = 'u32[144,128]{1,0:T(1,128)}', space=vmem, size = 0x12000, scoped, tag = 'internal scratch']
  %s0 = inlined_call_operand.hbm [shape: bf16[2,32], index: 0, kind: input, shape index: {}]
  %s1 = inlined_call_operand.hbm [shape: bf16[32,32], index: 1, kind: input, shape index: {}]
  %s2 = inlined_call_operand.vmem [shape: f32[1,32], index: 2, kind: input, shape index: {}]
  %s3 = inlined_call_operand.hbm [shape: f32[2,32], index: 3, kind: output, shape index: {}]
  %s4 = sld [smem:[#allocation0]]
  $region30: #{tpu_custom_call.1} parent=0
    _
  %s6 = ssub.s32 1, %s4
  %s7 = scalar_select 0, %s6, %s4
  $region1: #{tpu_custom_call.1} parent=0
    #allocation2 [shape = 'u8[512]{0}', space=vmem, size = 0x400, scoped, tag = 'input window, operand 0, single buffered']
    #allocation3 [shape = 's32[1]{0}', space=sflag, size = 0x4, scoped, tag = 'scoped memory for tpu_custom_call.1']
    #allocation4 [shape = 's32[1]{0}', space=sflag, size = 0x4, scoped, tag = 'scoped memory for tpu_custom_call.1']
    #allocation5 [shape = 'u8[8192]{0}', space=vmem, size = 0x2000, scoped, tag = 'input window, operand 1, single buffered']
    #allocation6 [shape = 's32[1]{0}', space=sflag, size = 0x4, scoped, tag = 'scoped memory for tpu_custom_call.1']
    #allocation7 [shape = 'u8[1024]{0}', space=vmem, size = 0x400, scoped, tag = 'output window, operand 0, single buffered']
    %8 = vsyncpa [#allocation3], 0
    %9 = vsyncpa [#allocation6], 0
    %10 = vsyncpa [#allocation4], 0
    // Predicated region
    $region2: #{tpu_custom_call.1} parent=1 // pred_check
      _
    $region3: #{tpu_custom_call.1} parent=1 // pred_check_branch
      %12 = sbr.rel (0) target = $region5
    $region4: #{tpu_custom_call.1} parent=1 // pred_region
      %s14 = ssub.s32 16, 16
      %15 = vsyncadd [#allocation3], %s14
      %s17 = sshll.u32 [#allocation2], 4
      %s18 = int_to_ptr.vmem [resolvable:$true] %s17
      %20 = dma.hbm_to_vmem [thread:$0]  %s0, 16, %s18, [#allocation3]
    $region5: #{tpu_custom_call.1} parent=1 // pred_fallthru
      _
    // Predicated region
    $region6: #{tpu_custom_call.1} parent=1 // pred_check
      _
    $region7: #{tpu_custom_call.1} parent=1 // pred_check_branch
      %22 = sbr.rel (0) target = $region9
    $region8: #{tpu_custom_call.1} parent=1 // pred_region
      %s24 = ssub.s32 256, 256
      %25 = vsyncadd [#allocation6], %s24
      %s26 = sshll.u32 [#allocation5], 4
      %s27 = int_to_ptr.vmem [resolvable:$true] %s26
      %32 = dma.hbm_to_vmem [thread:$0]  %s1, 256, %s27, [#allocation6], 64, 64, 4
    $region9: #{tpu_custom_call.1} parent=1 // pred_fallthru
      _
    // Predicated region
    $region10: #{tpu_custom_call.1} parent=1 // pred_check
      _
    $region11: #{tpu_custom_call.1} parent=1 // pred_check_branch
      %34 = sbr.rel (0) target = $region13
    $region12: #{tpu_custom_call.1} parent=1 // pred_region
      _
    $region13: #{tpu_custom_call.1} parent=1 // pred_fallthru
      _
    // Predicated region
    $region14: #{tpu_custom_call.1} parent=1 // pred_check
      _
    $region15: #{tpu_custom_call.1} parent=1 // pred_check_branch
      %36 = sbr.rel (0) target = $region17
    $region16: #{tpu_custom_call.1} parent=1 // pred_region
      %37 = dma.done [#allocation3], 16
    $region17: #{tpu_custom_call.1} parent=1 // pred_fallthru
      _
    // Predicated region
    $region18: #{tpu_custom_call.1} parent=1 // pred_check
      _
    $region19: #{tpu_custom_call.1} parent=1 // pred_check_branch
      %39 = sbr.rel (0) target = $region21
    $region20: #{tpu_custom_call.1} parent=1 // pred_region
      %40 = dma.done [#allocation6], 256
    $region21: #{tpu_custom_call.1} parent=1 // pred_fallthru
      _
    %v42 = vld [vmem:[#allocation2] sm:$0x1]
    %v43 = vld [vmem:[#allocation5] sm:$0xf]
    %v44 = vld [vmem:[#allocation5 + $0x4] sm:$0xf]
    %v45 = vld [vmem:[#allocation5 + $0x8] sm:$0xf]
    %v46 = vld [vmem:[#allocation5 + $0xc] sm:$0xf]
    %v47 = vld [vmem:[%s2] sm:$0x1]
    %v49 = vlaneseq
    %v50 = vshrl.u32 %v49, 7
    %v51 = vsub.s32 0, %v50
    %v52 = vrot.slane %v47, %v51
    %v58 = vunpack.c.l.b16 %v43
    %v59 = vunpack.c.l.b16 %v44
    %v60 = vunpack.c.l.b16 %v45
    %v61 = vunpack.c.l.b16 %v46
    %v62 = vpack.c.b16 %v59, %v58
    %v63 = vpack.c.b16 %v61, %v60
    %vm66 = vcmask 261120
    %v68 = vsel %vm66, %v42, 0
    %70 = vmatprep.subr.bf16.mxu0 0
    %71 = vmatpush1.bf16.msra.mxu0 %v62
    %72 = vmatprep.subr.bf16.mxu0 0
    %73 = vmatpush1.bf16.msra.mxu0 %v63
    %74 = vmatprep.subr.bf16.mxu0 0
    %75 = vmatpush1.bf16.msra.mxu0 0
    %76 = vmatprep.subr.bf16.mxu0 0
    %77 = vmatpush1.bf16.msra.mxu0 0
    %78 = vmatprep.subr.bf16.mxu0 0
    %79 = vmatpush1.bf16.msra.mxu0 0
    %80 = vmatprep.subr.bf16.mxu0 0
    %81 = vmatpush1.bf16.msra.mxu0 0
    %82 = vmatprep.subr.bf16.mxu0 0
    %83 = vmatpush1.bf16.msra.mxu0 0
    %84 = vmatprep.subr.bf16.mxu0 0
    %85 = vmatpush1.bf16.msra.mxu0 0
    %86 = vmatprep.subr.bf16.mxu0 0
    %87 = vmatpush1.bf16.msra.mxu0 0
    %88 = vmatprep.subr.bf16.mxu0 0
    %89 = vmatpush1.bf16.msra.mxu0 0
    %90 = vmatprep.subr.bf16.mxu0 0
    %91 = vmatpush1.bf16.msra.mxu0 0
    %92 = vmatprep.subr.bf16.mxu0 0
    %93 = vmatpush1.bf16.msra.mxu0 0
    %94 = vmatprep.subr.bf16.mxu0 0
    %95 = vmatpush1.bf16.msra.mxu0 0
    %96 = vmatprep.subr.bf16.mxu0 0
    %97 = vmatpush1.bf16.msra.mxu0 0
    %98 = vmatprep.subr.bf16.mxu0 0
    %99 = vmatpush1.bf16.msra.mxu0 0
    %100 = vmatprep.subr.bf16.mxu0 0
    %101 = vmatpush1.bf16.msra.mxu0 0
    %102 = vmatprep.mubr.bf16.mxu0 0
    %103 = vmatmul.mubr.bf16.gmra.mrb[0].mxu0 %v68
    %v104 = vpop.f32.mrb[0].mxu0
    %v105 = vadd.f32 %v52, %v104
    %v106 = vpop.f32.mrb[0].mxu0
    %v107 = vpop.f32.mrb[0].mxu0
    %v108 = vpop.f32.mrb[0].mxu0
    %109 = vdwg.mxu0
    %v110 = vtanh.pop %v105
    %v111 = vmul.f32 %v110, %v110
    %vm112 = vcmask 254976
    %v113 = vsel %vm112, %v111, 0.0
    %114 = vadd.xlane.f32.xlu0 %v113
    %v115 = vpop.xlane.xlu0 %114
    %v116 = vmax.f32 %v115, 1e-24
    %v117 = vrsqrt.pop %v116
    %v118 = vmul.f32 %v110, %v117
    %119 = vst.msk [vmem:[#allocation7] sm:$0x3] %vm112, %v118
    // Predicated region
    $region22: #{tpu_custom_call.1} parent=1 // pred_check
      _
    $region23: #{tpu_custom_call.1} parent=1 // pred_check_branch
      %121 = sbr.rel (0) target = $region25
    $region24: #{tpu_custom_call.1} parent=1 // pred_region
      %s123 = ssub.s32 32, 32
      %124 = vsyncadd [#allocation4], %s123
      %s126 = sshll.u32 [#allocation7], 4
      %s127 = int_to_ptr.vmem [resolvable:$true] %s126
      %129 = dma.vmem_to_hbm [thread:$0]  %s127, 32, %s3, [#allocation4]
    $region25: #{tpu_custom_call.1} parent=1 // pred_fallthru
      _
    // Predicated region
    $region26: #{tpu_custom_call.1} parent=1 // pred_check
      _
    $region27: #{tpu_custom_call.1} parent=1 // pred_check_branch
      %131 = sbr.rel (0) target = $region29
    $region28: #{tpu_custom_call.1} parent=1 // pred_region
      %132 = dma.done [#allocation4], 32
    $region29: #{tpu_custom_call.1} parent=1 // pred_fallthru
      _
    %133 = vsyncpa [#allocation3], 1
    %134 = vsyncpa [#allocation6], 1
    %135 = vsyncpa [#allocation4], 1

</llo_original>
